<compile_context>
chip_gen: v6e
topology: v6e:2x2x1
jax: 0.10.0
libtpu: 0.0.40
codegen_flags: <defaults>
</compile_context>

<pallas_src>
import numpy as np
import jax
import jax.numpy as jnp
from jax.experimental import pallas as pl
from jax.experimental.pallas import tpu as pltpu


def _round_up(v, m):
    return ((v + m - 1) // m) * m


def _silu(v):
    # sigmoid via exp + approx reciprocal: both go to the EUP slot (free here),
    # keeping VPU slots for the adds/casts.  Math stays in f32.
    return v * pl.reciprocal(1.0 + jnp.exp(-v), approx=True)


def _dot_bf16(a_f32, w_ref):
    # bf16 operands -> MXU native; f32 accumulation preserves precision.
    return jnp.dot(a_f32.astype(jnp.bfloat16), w_ref[...],
                   preferred_element_type=jnp.float32)


def _resblock_proj_kernel(x_ref, t_ref, c_ref,
                          wxm_ref, bxm_ref, wt_ref, wc_ref, btc_ref,
                          w2_ref, b2_ref, out_ref):
    """input_dim != output_dim: modify_x is a Linear projection.

    wxm = [W1.T | Wm.T]  (in, 2*out)   bxm = [b1 | bm]  (1, 2*out)
    -> one MXU pass over x serves both dense1 and the skip projection.
    """
    out_dim = out_ref.shape[-1]
    x = x_ref[...]

    xw = _dot_bf16(x, wxm_ref) + bxm_ref[...]          # (tb, 2*out), f32
    h1 = _silu(xw[:, :out_dim])                        # dense1 half
    skip = xw[:, out_dim:]                             # modify_x half

    h1 = h1 + (_dot_bf16(_silu(t_ref[...]), wt_ref)
               + _dot_bf16(_silu(c_ref[...]), wc_ref)
               + btc_ref[...])                         # btc = bt + bc

    h2 = _silu(_dot_bf16(h1, w2_ref) + b2_ref[...])
    out_ref[...] = (h2 + skip).astype(out_ref.dtype)


def _resblock_ident_kernel(x_ref, t_ref, c_ref,
                           w1_ref, b1_ref, wt_ref, wc_ref, btc_ref,
                           w2_ref, b2_ref, out_ref):
    """input_dim == output_dim: identity skip (x added back exactly, in f32)."""
    x = x_ref[...]

    h1 = _silu(_dot_bf16(x, w1_ref) + b1_ref[...])
    h1 = h1 + (_dot_bf16(_silu(t_ref[...]), wt_ref)
               + _dot_bf16(_silu(c_ref[...]), wc_ref)
               + btc_ref[...])

    h2 = _silu(_dot_bf16(h1, w2_ref) + b2_ref[...])
    out_ref[...] = (h2 + x).astype(out_ref.dtype)


def prepare_params(params, *, weight_dtype=jnp.bfloat16):
    """One-time host-side prep: transpose to (in, out), cast weights to bf16,
    fuse biases, concat W1|Wm.  Call once (outside any sampling loop)."""
    f32 = jnp.float32
    out_dim = int(params["w1"].shape[0])
    prep = {"out_dim": out_dim}

    prep["wt"] = jnp.asarray(params["wt"]).T.astype(weight_dtype)
    prep["wc"] = jnp.asarray(params["wc"]).T.astype(weight_dtype)
    prep["btc"] = (jnp.asarray(params["bt"], dtype=f32)
                   + jnp.asarray(params["bc"], dtype=f32)).reshape(1, out_dim)
    prep["w2"] = jnp.asarray(params["w2"]).T.astype(weight_dtype)
    prep["b2"] = jnp.asarray(params["b2"], dtype=f32).reshape(1, out_dim)

    if params.get("wm") is not None:
        prep["has_proj"] = True
        prep["wxm"] = jnp.concatenate(
            [jnp.asarray(params["w1"]).T, jnp.asarray(params["wm"]).T],
            axis=1).astype(weight_dtype)                       # (in, 2*out)
        prep["bxm"] = jnp.concatenate(
            [jnp.asarray(params["b1"], dtype=f32),
             jnp.asarray(params["bm"], dtype=f32)]).reshape(1, 2 * out_dim)
    else:
        prep["has_proj"] = False
        prep["w1"] = jnp.asarray(params["w1"]).T.astype(weight_dtype)
        prep["b1"] = jnp.asarray(params["b1"], dtype=f32).reshape(1, out_dim)
    return prep


def residual_block(x, t, c, prep, *, block_b=1024, out_dtype=jnp.float32):
    """Fused Pallas equivalent of Residual_Block.forward(x, t, c).

    x : (B, input_dim)   t, c : (B, t_dim)
    prep : output of prepare_params(raw_torch_layout_params)
    """
    B, in_dim = x.shape
    t_dim = t.shape[1]
    out_dim = prep["out_dim"]
    f32 = jnp.float32

    # Batch tile: multiple of 8 sublanes, as big as block_b allows.
    tb = min(_round_up(block_b, 8), _round_up(B, 8))
    # v7x megacore: once the batch is large, ensure >= 2 grid steps so the
    # "parallel" axis can be sharded across both TensorCores.
    if B > 512 and pl.cdiv(B, tb) < 2:
        tb = _round_up(pl.cdiv(B, 2), 8)
    grid = (pl.cdiv(B, tb),)

    def row_spec(d):
        return pl.BlockSpec((tb, d), lambda i: (i, 0))

    def resident_spec(arr):
        # Constant index_map -> block stays VMEM-resident across grid steps.
        return pl.BlockSpec(arr.shape, lambda i: (0, 0))

    if prep["has_proj"]:
        kernel = _resblock_proj_kernel
        weights = [prep["wxm"], prep["bxm"], prep["wt"], prep["wc"],
                   prep["btc"], prep["w2"], prep["b2"]]
    else:
        kernel = _resblock_ident_kernel
        weights = [prep["w1"], prep["b1"], prep["wt"], prep["wc"],
                   prep["btc"], prep["w2"], prep["b2"]]

    in_specs = ([row_spec(in_dim), row_spec(t_dim), row_spec(t_dim)]
                + [resident_spec(w) for w in weights])

    return pl.pallas_call(
        kernel,
        out_shape=jax.ShapeDtypeStruct((B, out_dim), out_dtype),
        grid=grid,
        in_specs=in_specs,
        out_specs=pl.BlockSpec((tb, out_dim), lambda i: (i, 0)),
        compiler_params=pltpu.CompilerParams(
            dimension_semantics=("parallel",)),
    )(x.astype(f32), t.astype(f32), c.astype(f32), *weights)


def _reference(x, t, c, params):
    """Pure-JAX f32 reference mirroring the PyTorch module exactly."""
    hp = jax.lax.Precision.HIGHEST

    def silu(v):
        return v * jax.nn.sigmoid(v)

    def lin(v, w, b):
        return jnp.dot(v, w.T, precision=hp) + b

    h1 = (silu(lin(x, params["w1"], params["b1"]))
          + lin(silu(t), params["wt"], params["bt"])
          + lin(silu(c), params["wc"], params["bc"]))
    h2 = silu(lin(h1, params["w2"], params["b2"]))
    if params.get("wm") is not None:
        skip = lin(x, params["wm"], params["bm"])
    else:
        skip = x
    return h2 + skip


if __name__ == "__main__":
    key = jax.random.PRNGKey(0)
    ks = jax.random.split(key, 16)

    # Small demo shapes; output/t dims are 128 so stores and the W1|Wm split
    # are lane-dense / lane-aligned.
    B, IN_DIM, OUT_DIM, T_DIM = 8, 64, 128, 128

    def init_linear(kw, kb, fan_in, fan_out):
        w = jax.random.normal(kw, (fan_out, fan_in), dtype=jnp.float32) * 0.05
        b = jax.random.normal(kb, (fan_out,), dtype=jnp.float32) * 0.01
        return w, b

    w1, b1 = init_linear(ks[0], ks[1], IN_DIM, OUT_DIM)
    wt, bt = init_linear(ks[2], ks[3], T_DIM, OUT_DIM)
    wc, bc = init_linear(ks[4], ks[5], T_DIM, OUT_DIM)
    w2, b2 = init_linear(ks[6], ks[7], OUT_DIM, OUT_DIM)
    wm, bm = init_linear(ks[8], ks[9], IN_DIM, OUT_DIM)

    x = jax.random.normal(ks[10], (B, IN_DIM), dtype=jnp.float32)
    t = jax.random.normal(ks[11], (B, T_DIM), dtype=jnp.float32)
    c = jax.random.normal(ks[12], (B, T_DIM), dtype=jnp.float32)

    # Case 1: input_dim != output_dim -> modify_x is a Linear projection.
    params = dict(w1=w1, b1=b1, wt=wt, bt=bt, wc=wc, bc=bc,
                  w2=w2, b2=b2, wm=wm, bm=bm)
    prep = prepare_params(params)          # one-time host prep (bf16 weights)
    out = jax.block_until_ready(residual_block(x, t, c, prep))
    ref = _reference(x, t, c, params)
    assert out.shape == (B, OUT_DIM), out.shape
    # bf16 MXU operands -> looser tolerance vs. the f32 reference.
    np.testing.assert_allclose(np.asarray(out), np.asarray(ref),
                               rtol=2e-2, atol=2e-2)

    # Case 2: input_dim == output_dim -> modify_x is Identity.
    w1b, b1b = init_linear(ks[13], ks[14], OUT_DIM, OUT_DIM)
    x2 = jax.random.normal(ks[15], (B, OUT_DIM), dtype=jnp.float32)
    params2 = dict(w1=w1b, b1=b1b, wt=wt, bt=bt, wc=wc, bc=bc,
                   w2=w2, b2=b2, wm=None, bm=None)
    prep2 = prepare_params(params2)
    out2 = jax.block_until_ready(residual_block(x2, t, c, prep2))
    ref2 = _reference(x2, t, c, params2)
    np.testing.assert_allclose(np.asarray(out2), np.asarray(ref2),
                               rtol=2e-2, atol=2e-2)

    print("KERNEL_OK")
</pallas_src>

<mosaic_0001>
module attributes {stable_mosaic.version = 11 : i64} {
  func.func @_resblock_proj_kernel(%arg0: i32, %arg1: memref<8x64xf32, #tpu.memory_space<vmem>>, %arg2: memref<8x128xf32, #tpu.memory_space<vmem>>, %arg3: memref<8x128xf32, #tpu.memory_space<vmem>>, %arg4: memref<64x256xbf16, #tpu.memory_space<vmem>>, %arg5: memref<1x256xf32, #tpu.memory_space<vmem>>, %arg6: memref<128x128xbf16, #tpu.memory_space<vmem>>, %arg7: memref<128x128xbf16, #tpu.memory_space<vmem>>, %arg8: memref<1x128xf32, #tpu.memory_space<vmem>>, %arg9: memref<128x128xbf16, #tpu.memory_space<vmem>>, %arg10: memref<1x128xf32, #tpu.memory_space<vmem>>, %arg11: memref<8x128xf32, #tpu.memory_space<vmem>>) attributes {dimension_semantics = [#tpu.dimension_semantics<parallel>], iteration_bounds = array<i64: 1>, scalar_prefetch = 0 : i64, scratch_operands = 0 : i64, tpu.core_type = #tpu.core_type<tc>, window_params = [{transform_indices = @transform_0, window_bounds = array<i64: 8, 64>}, {transform_indices = @transform_1, window_bounds = array<i64: 8, 128>}, {transform_indices = @transform_2, window_bounds = array<i64: 8, 128>}, {pipeline_mode = #tpu.pipeline_mode<synchronous>, transform_indices = @transform_3, window_bounds = array<i64: 64, 256>}, {pipeline_mode = #tpu.pipeline_mode<synchronous>, transform_indices = @transform_4, window_bounds = array<i64: 1, 256>}, {pipeline_mode = #tpu.pipeline_mode<synchronous>, transform_indices = @transform_5, window_bounds = array<i64: 128, 128>}, {pipeline_mode = #tpu.pipeline_mode<synchronous>, transform_indices = @transform_6, window_bounds = array<i64: 128, 128>}, {pipeline_mode = #tpu.pipeline_mode<synchronous>, transform_indices = @transform_7, window_bounds = array<i64: 1, 128>}, {pipeline_mode = #tpu.pipeline_mode<synchronous>, transform_indices = @transform_8, window_bounds = array<i64: 128, 128>}, {pipeline_mode = #tpu.pipeline_mode<synchronous>, transform_indices = @transform_9, window_bounds = array<i64: 1, 128>}, {transform_indices = @transform_10, window_bounds = array<i64: 8, 128>}]} {
    %c0 = arith.constant 0 : index
    %c0_0 = arith.constant 0 : index
    %0 = vector.load %arg1[%c0, %c0_0] : memref<8x64xf32, #tpu.memory_space<vmem>>, vector<8x64xf32>
    %1 = arith.truncf %0 : vector<8x64xf32> to vector<8x64xbf16>
    %c0_1 = arith.constant 0 : index
    %c0_2 = arith.constant 0 : index
    %2 = vector.load %arg4[%c0_1, %c0_2] : memref<64x256xbf16, #tpu.memory_space<vmem>>, vector<64x256xbf16>
    %cst = arith.constant dense<0.000000e+00> : vector<8x256xf32>
    %3 = tpu.matmul %1, %2, %cst {dimension_numbers = #tpu.dot_dimension_numbers<[1], [0], [0], [1], [0, 0, 1, 1], [], []>} : vector<8x64xbf16>, vector<64x256xbf16>, vector<8x256xf32> -> vector<8x256xf32>
    %c0_3 = arith.constant 0 : index
    %c0_4 = arith.constant 0 : index
    %4 = vector.load %arg5[%c0_3, %c0_4] : memref<1x256xf32, #tpu.memory_space<vmem>>, vector<1x256xf32>
    %5 = vector.broadcast %4 : vector<1x256xf32> to vector<8x256xf32>
    %6 = arith.addf %3, %5 : vector<8x256xf32>
    %7 = vector.extract_strided_slice %6 {offsets = [0, 0], sizes = [8, 128], strides = [1, 1]} : vector<8x256xf32> to vector<8x128xf32>
    %cst_5 = arith.constant 0.000000e+00 : f32
    %8 = vector.broadcast %cst_5 : f32 to vector<8x128xf32>
    %9 = arith.subf %8, %7 : vector<8x128xf32>
    %10 = math.exp %9 : vector<8x128xf32>
    %cst_6 = arith.constant 1.000000e+00 : f32
    %11 = vector.broadcast %cst_6 : f32 to vector<8x128xf32>
    %12 = arith.addf %11, %10 : vector<8x128xf32>
    %13 = tpu.reciprocal %12 {approx = true} : vector<8x128xf32> -> vector<8x128xf32>
    %14 = arith.mulf %7, %13 : vector<8x128xf32>
    %15 = vector.extract_strided_slice %6 {offsets = [0, 128], sizes = [8, 128], strides = [1, 1]} : vector<8x256xf32> to vector<8x128xf32>
    %c0_7 = arith.constant 0 : index
    %c0_8 = arith.constant 0 : index
    %16 = vector.load %arg2[%c0_7, %c0_8] : memref<8x128xf32, #tpu.memory_space<vmem>>, vector<8x128xf32>
    %cst_9 = arith.constant 0.000000e+00 : f32
    %17 = vector.broadcast %cst_9 : f32 to vector<8x128xf32>
    %18 = arith.subf %17, %16 : vector<8x128xf32>
    %19 = math.exp %18 : vector<8x128xf32>
    %cst_10 = arith.constant 1.000000e+00 : f32
    %20 = vector.broadcast %cst_10 : f32 to vector<8x128xf32>
    %21 = arith.addf %20, %19 : vector<8x128xf32>
    %22 = tpu.reciprocal %21 {approx = true} : vector<8x128xf32> -> vector<8x128xf32>
    %23 = arith.mulf %16, %22 : vector<8x128xf32>
    %24 = arith.truncf %23 : vector<8x128xf32> to vector<8x128xbf16>
    %c0_11 = arith.constant 0 : index
    %c0_12 = arith.constant 0 : index
    %25 = vector.load %arg6[%c0_11, %c0_12] : memref<128x128xbf16, #tpu.memory_space<vmem>>, vector<128x128xbf16>
    %cst_13 = arith.constant dense<0.000000e+00> : vector<8x128xf32>
    %26 = tpu.matmul %24, %25, %cst_13 {dimension_numbers = #tpu.dot_dimension_numbers<[1], [0], [0], [1], [0, 0, 1, 1], [], []>} : vector<8x128xbf16>, vector<128x128xbf16>, vector<8x128xf32> -> vector<8x128xf32>
    %c0_14 = arith.constant 0 : index
    %c0_15 = arith.constant 0 : index
    %27 = vector.load %arg3[%c0_14, %c0_15] : memref<8x128xf32, #tpu.memory_space<vmem>>, vector<8x128xf32>
    %cst_16 = arith.constant 0.000000e+00 : f32
    %28 = vector.broadcast %cst_16 : f32 to vector<8x128xf32>
    %29 = arith.subf %28, %27 : vector<8x128xf32>
    %30 = math.exp %29 : vector<8x128xf32>
    %cst_17 = arith.constant 1.000000e+00 : f32
    %31 = vector.broadcast %cst_17 : f32 to vector<8x128xf32>
    %32 = arith.addf %31, %30 : vector<8x128xf32>
    %33 = tpu.reciprocal %32 {approx = true} : vector<8x128xf32> -> vector<8x128xf32>
    %34 = arith.mulf %27, %33 : vector<8x128xf32>
    %35 = arith.truncf %34 : vector<8x128xf32> to vector<8x128xbf16>
    %c0_18 = arith.constant 0 : index
    %c0_19 = arith.constant 0 : index
    %36 = vector.load %arg7[%c0_18, %c0_19] : memref<128x128xbf16, #tpu.memory_space<vmem>>, vector<128x128xbf16>
    %cst_20 = arith.constant dense<0.000000e+00> : vector<8x128xf32>
    %37 = tpu.matmul %35, %36, %cst_20 {dimension_numbers = #tpu.dot_dimension_numbers<[1], [0], [0], [1], [0, 0, 1, 1], [], []>} : vector<8x128xbf16>, vector<128x128xbf16>, vector<8x128xf32> -> vector<8x128xf32>
    %38 = arith.addf %26, %37 : vector<8x128xf32>
    %c0_21 = arith.constant 0 : index
    %c0_22 = arith.constant 0 : index
    %39 = vector.load %arg8[%c0_21, %c0_22] : memref<1x128xf32, #tpu.memory_space<vmem>>, vector<1x128xf32>
    %40 = vector.broadcast %39 : vector<1x128xf32> to vector<8x128xf32>
    %41 = arith.addf %38, %40 : vector<8x128xf32>
    %42 = arith.addf %14, %41 : vector<8x128xf32>
    %43 = arith.truncf %42 : vector<8x128xf32> to vector<8x128xbf16>
    %c0_23 = arith.constant 0 : index
    %c0_24 = arith.constant 0 : index
    %44 = vector.load %arg9[%c0_23, %c0_24] : memref<128x128xbf16, #tpu.memory_space<vmem>>, vector<128x128xbf16>
    %cst_25 = arith.constant dense<0.000000e+00> : vector<8x128xf32>
    %45 = tpu.matmul %43, %44, %cst_25 {dimension_numbers = #tpu.dot_dimension_numbers<[1], [0], [0], [1], [0, 0, 1, 1], [], []>} : vector<8x128xbf16>, vector<128x128xbf16>, vector<8x128xf32> -> vector<8x128xf32>
    %c0_26 = arith.constant 0 : index
    %c0_27 = arith.constant 0 : index
    %46 = vector.load %arg10[%c0_26, %c0_27] : memref<1x128xf32, #tpu.memory_space<vmem>>, vector<1x128xf32>
    %47 = vector.broadcast %46 : vector<1x128xf32> to vector<8x128xf32>
    %48 = arith.addf %45, %47 : vector<8x128xf32>
    %cst_28 = arith.constant 0.000000e+00 : f32
    %49 = vector.broadcast %cst_28 : f32 to vector<8x128xf32>
    %50 = arith.subf %49, %48 : vector<8x128xf32>
    %51 = math.exp %50 : vector<8x128xf32>
    %cst_29 = arith.constant 1.000000e+00 : f32
    %52 = vector.broadcast %cst_29 : f32 to vector<8x128xf32>
    %53 = arith.addf %52, %51 : vector<8x128xf32>
    %54 = tpu.reciprocal %53 {approx = true} : vector<8x128xf32> -> vector<8x128xf32>
    %55 = arith.mulf %48, %54 : vector<8x128xf32>
    %56 = arith.addf %55, %15 : vector<8x128xf32>
    %c0_30 = arith.constant 0 : index
    %c0_31 = arith.constant 0 : index
    %57 = vector.load %arg11[%c0_30, %c0_31] : memref<8x128xf32, #tpu.memory_space<vmem>>, vector<8x128xf32>
    tpu.vector_store %arg11[%c0_30, %c0_31], %56 {strides = array<i32>} : memref<8x128xf32, #tpu.memory_space<vmem>>, vector<8x128xf32>,
    return
  }
  func.func @transform_0(%arg0: i32) -> (i32, i32) {
    %c0_i32 = arith.constant 0 : i32
    %c0_i32_0 = arith.constant 0 : i32
    return %arg0, %c0_i32 : i32, i32
  }
  func.func @transform_1(%arg0: i32) -> (i32, i32) {
    %c0_i32 = arith.constant 0 : i32
    %c0_i32_0 = arith.constant 0 : i32
    return %arg0, %c0_i32 : i32, i32
  }
  func.func @transform_2(%arg0: i32) -> (i32, i32) {
    %c0_i32 = arith.constant 0 : i32
    %c0_i32_0 = arith.constant 0 : i32
    return %arg0, %c0_i32 : i32, i32
  }
  func.func @transform_3(%arg0: i32) -> (i32, i32) {
    %c0_i32 = arith.constant 0 : i32
    %c0_i32_0 = arith.constant 0 : i32
    %c0_i32_1 = arith.constant 0 : i32
    return %c0_i32, %c0_i32_0 : i32, i32
  }
  func.func @transform_4(%arg0: i32) -> (i32, i32) {
    %c0_i32 = arith.constant 0 : i32
    %c0_i32_0 = arith.constant 0 : i32
    %c0_i32_1 = arith.constant 0 : i32
    return %c0_i32, %c0_i32_0 : i32, i32
  }
  func.func @transform_5(%arg0: i32) -> (i32, i32) {
    %c0_i32 = arith.constant 0 : i32
    %c0_i32_0 = arith.constant 0 : i32
    %c0_i32_1 = arith.constant 0 : i32
    return %c0_i32, %c0_i32_0 : i32, i32
  }
  func.func @transform_6(%arg0: i32) -> (i32, i32) {
    %c0_i32 = arith.constant 0 : i32
    %c0_i32_0 = arith.constant 0 : i32
    %c0_i32_1 = arith.constant 0 : i32
    return %c0_i32, %c0_i32_0 : i32, i32
  }
  func.func @transform_7(%arg0: i32) -> (i32, i32) {
    %c0_i32 = arith.constant 0 : i32
    %c0_i32_0 = arith.constant 0 : i32
    %c0_i32_1 = arith.constant 0 : i32
    return %c0_i32, %c0_i32_0 : i32, i32
  }
  func.func @transform_8(%arg0: i32) -> (i32, i32) {
    %c0_i32 = arith.constant 0 : i32
    %c0_i32_0 = arith.constant 0 : i32
    %c0_i32_1 = arith.constant 0 : i32
    return %c0_i32, %c0_i32_0 : i32, i32
  }
  func.func @transform_9(%arg0: i32) -> (i32, i32) {
    %c0_i32 = arith.constant 0 : i32
    %c0_i32_0 = arith.constant 0 : i32
    %c0_i32_1 = arith.constant 0 : i32
    return %c0_i32, %c0_i32_0 : i32, i32
  }
  func.func @transform_10(%arg0: i32) -> (i32, i32) {
    %c0_i32 = arith.constant 0 : i32
    %c0_i32_0 = arith.constant 0 : i32
    return %arg0, %c0_i32 : i32, i32
  }
}

</mosaic_0001>

<llo_original>
// kernel: tpu_custom_call.1
$region0: #{tpu_custom_call.1}
  #allocation0 [shape = 'u32[]', space=smem, size = 0x4, offset = 0x4, fixed_abs, tag = 'smem constant byte address 0x4 - core index']
  #allocation1 [shape = 'u32[144,128]{1,0:T(1,128)}', space=vmem, size = 0x12000, scoped, tag = 'internal scratch']
  %s0 = inlined_call_operand.hbm [shape: f32[8,64], index: 0, kind: input, shape index: {}]
  %s1 = inlined_call_operand.hbm [shape: f32[8,128], index: 1, kind: input, shape index: {}]
  %s2 = inlined_call_operand.hbm [shape: f32[8,128], index: 2, kind: input, shape index: {}]
  %s3 = inlined_call_operand.hbm [shape: bf16[64,256], index: 3, kind: input, shape index: {}]
  %s4 = inlined_call_operand.vmem [shape: f32[1,256], index: 4, kind: input, shape index: {}]
  %s5 = inlined_call_operand.hbm [shape: bf16[128,128], index: 5, kind: input, shape index: {}]
  %s6 = inlined_call_operand.hbm [shape: bf16[128,128], index: 6, kind: input, shape index: {}]
  %s7 = inlined_call_operand.vmem [shape: f32[1,128], index: 7, kind: input, shape index: {}]
  %s8 = inlined_call_operand.hbm [shape: bf16[128,128], index: 8, kind: input, shape index: {}]
  %s9 = inlined_call_operand.vmem [shape: f32[1,128], index: 9, kind: input, shape index: {}]
  %s10 = inlined_call_operand.hbm [shape: f32[8,128], index: 10, kind: output, shape index: {}]
  %s11 = sld [smem:[#allocation0]]
  $region78: #{tpu_custom_call.1} parent=0
    _
  %s13 = ssub.s32 1, %s11
  %s14 = scalar_select 0, %s13, %s11
  $region1: #{tpu_custom_call.1} parent=0
    #allocation2 [shape = 'u8[4096]{0}', space=vmem, size = 0x1000, scoped, tag = 'input window, operand 0, single buffered']
    #allocation3 [shape = 's32[1]{0}', space=sflag, size = 0x4, scoped, tag = 'scoped memory for tpu_custom_call.1']
    #allocation4 [shape = 's32[1]{0}', space=sflag, size = 0x4, scoped, tag = 'scoped memory for tpu_custom_call.1']
    #allocation5 [shape = 'u8[4096]{0}', space=vmem, size = 0x1000, scoped, tag = 'input window, operand 1, single buffered']
    #allocation6 [shape = 's32[1]{0}', space=sflag, size = 0x4, scoped, tag = 'scoped memory for tpu_custom_call.1']
    #allocation7 [shape = 'u8[4096]{0}', space=vmem, size = 0x1000, scoped, tag = 'input window, operand 2, single buffered']
    #allocation8 [shape = 'u8[32768]{0}', space=vmem, size = 0x8000, scoped, tag = 'input window, operand 3, single buffered']
    #allocation9 [shape = 's32[1]{0}', space=sflag, size = 0x4, scoped, tag = 'scoped memory for tpu_custom_call.1']
    #allocation10 [shape = 'u8[32768]{0}', space=vmem, size = 0x8000, scoped, tag = 'input window, operand 5, single buffered']
    #allocation11 [shape = 'u8[32768]{0}', space=vmem, size = 0x8000, scoped, tag = 'input window, operand 6, single buffered']
    #allocation12 [shape = 's32[1]{0}', space=sflag, size = 0x4, scoped, tag = 'scoped memory for tpu_custom_call.1']
    #allocation13 [shape = 'u8[32768]{0}', space=vmem, size = 0x8000, scoped, tag = 'input window, operand 8, single buffered']
    #allocation14 [shape = 'u8[4096]{0}', space=vmem, size = 0x1000, scoped, tag = 'output window, operand 0, single buffered']
    %15 = vsyncpa [#allocation3], 0
    %16 = vsyncpa [#allocation6], 0
    %17 = vsyncpa [#allocation9], 0
    %18 = vsyncpa [#allocation12], 0
    %19 = vsyncpa [#allocation4], 0
    // Predicated region
    $region2: #{tpu_custom_call.1} parent=1 // pred_check
      _
    $region3: #{tpu_custom_call.1} parent=1 // pred_check_branch
      %21 = sbr.rel (0) target = $region5
    $region4: #{tpu_custom_call.1} parent=1 // pred_region
      %s23 = ssub.s32 128, 128
      %24 = vsyncadd [#allocation3], %s23
      %s26 = sshll.u32 [#allocation2], 4
      %s27 = int_to_ptr.vmem [resolvable:$true] %s26
      %29 = dma.hbm_to_vmem [thread:$0]  %s0, 128, %s27, [#allocation3]
    $region5: #{tpu_custom_call.1} parent=1 // pred_fallthru
      _
    // Predicated region
    $region6: #{tpu_custom_call.1} parent=1 // pred_check
      _
    $region7: #{tpu_custom_call.1} parent=1 // pred_check_branch
      %31 = sbr.rel (0) target = $region9
    $region8: #{tpu_custom_call.1} parent=1 // pred_region
      %s33 = ssub.s32 128, 128
      %34 = vsyncadd [#allocation6], %s33
      %s36 = sshll.u32 [#allocation5], 4
      %s37 = int_to_ptr.vmem [resolvable:$true] %s36
      %39 = dma.hbm_to_vmem [thread:$0]  %s1, 128, %s37, [#allocation6]
    $region9: #{tpu_custom_call.1} parent=1 // pred_fallthru
      _
    // Predicated region
    $region10: #{tpu_custom_call.1} parent=1 // pred_check
      _
    $region11: #{tpu_custom_call.1} parent=1 // pred_check_branch
      %41 = sbr.rel (0) target = $region13
    $region12: #{tpu_custom_call.1} parent=1 // pred_region
      %s43 = ssub.s32 128, 128
      %44 = vsyncadd [#allocation6], %s43
      %s46 = sshll.u32 [#allocation7], 4
      %s47 = int_to_ptr.vmem [resolvable:$true] %s46
      %49 = dma.hbm_to_vmem [thread:$0]  %s2, 128, %s47, [#allocation6]
    $region13: #{tpu_custom_call.1} parent=1 // pred_fallthru
      _
    // Predicated region
    $region14: #{tpu_custom_call.1} parent=1 // pred_check
      _
    $region15: #{tpu_custom_call.1} parent=1 // pred_check_branch
      %51 = sbr.rel (0) target = $region17
    $region16: #{tpu_custom_call.1} parent=1 // pred_region
      %s53 = ssub.s32 1024, 1024
      %54 = vsyncadd [#allocation9], %s53
      %s55 = sshll.u32 [#allocation8], 4
      %s56 = int_to_ptr.vmem [resolvable:$true] %s55
      %61 = dma.hbm_to_vmem [thread:$0]  %s3, 1024, %s56, [#allocation9], 128, 128, 8
    $region17: #{tpu_custom_call.1} parent=1 // pred_fallthru
      _
    // Predicated region
    $region18: #{tpu_custom_call.1} parent=1 // pred_check
      _
    $region19: #{tpu_custom_call.1} parent=1 // pred_check_branch
      %63 = sbr.rel (0) target = $region21
    $region20: #{tpu_custom_call.1} parent=1 // pred_region
      _
    $region21: #{tpu_custom_call.1} parent=1 // pred_fallthru
      _
    // Predicated region
    $region22: #{tpu_custom_call.1} parent=1 // pred_check
      _
    $region23: #{tpu_custom_call.1} parent=1 // pred_check_branch
      %65 = sbr.rel (0) target = $region25
    $region24: #{tpu_custom_call.1} parent=1 // pred_region
      %s67 = ssub.s32 1024, 1024
      %68 = vsyncadd [#allocation9], %s67
      %s69 = sshll.u32 [#allocation10], 4
      %s70 = int_to_ptr.vmem [resolvable:$true] %s69
      %75 = dma.hbm_to_vmem [thread:$0]  %s5, 1024, %s70, [#allocation9], 64, 64, 4
    $region25: #{tpu_custom_call.1} parent=1 // pred_fallthru
      _
    // Predicated region
    $region26: #{tpu_custom_call.1} parent=1 // pred_check
      _
    $region27: #{tpu_custom_call.1} parent=1 // pred_check_branch
      %77 = sbr.rel (0) target = $region29
    $region28: #{tpu_custom_call.1} parent=1 // pred_region
      %s79 = ssub.s32 1024, 1024
      %80 = vsyncadd [#allocation12], %s79
      %s81 = sshll.u32 [#allocation11], 4
      %s82 = int_to_ptr.vmem [resolvable:$true] %s81
      %87 = dma.hbm_to_vmem [thread:$0]  %s6, 1024, %s82, [#allocation12], 64, 64, 4
    $region29: #{tpu_custom_call.1} parent=1 // pred_fallthru
      _
    // Predicated region
    $region30: #{tpu_custom_call.1} parent=1 // pred_check
      _
    $region31: #{tpu_custom_call.1} parent=1 // pred_check_branch
      %89 = sbr.rel (0) target = $region33
    $region32: #{tpu_custom_call.1} parent=1 // pred_region
      _
    $region33: #{tpu_custom_call.1} parent=1 // pred_fallthru
      _
    // Predicated region
    $region34: #{tpu_custom_call.1} parent=1 // pred_check
      _
    $region35: #{tpu_custom_call.1} parent=1 // pred_check_branch
      %91 = sbr.rel (0) target = $region37
    $region36: #{tpu_custom_call.1} parent=1 // pred_region
      %s93 = ssub.s32 1024, 1024
      %94 = vsyncadd [#allocation12], %s93
      %s95 = sshll.u32 [#allocation13], 4
      %s96 = int_to_ptr.vmem [resolvable:$true] %s95
      %101 = dma.hbm_to_vmem [thread:$0]  %s8, 1024, %s96, [#allocation12], 64, 64, 4
    $region37: #{tpu_custom_call.1} parent=1 // pred_fallthru
      _
    // Predicated region
    $region38: #{tpu_custom_call.1} parent=1 // pred_check
      _
    $region39: #{tpu_custom_call.1} parent=1 // pred_check_branch
      %103 = sbr.rel (0) target = $region41
    $region40: #{tpu_custom_call.1} parent=1 // pred_region
      _
    $region41: #{tpu_custom_call.1} parent=1 // pred_fallthru
      _
    // Predicated region
    $region42: #{tpu_custom_call.1} parent=1 // pred_check
      _
    $region43: #{tpu_custom_call.1} parent=1 // pred_check_branch
      %105 = sbr.rel (0) target = $region45
    $region44: #{tpu_custom_call.1} parent=1 // pred_region
      %106 = dma.done [#allocation3], 128
    $region45: #{tpu_custom_call.1} parent=1 // pred_fallthru
      _
    // Predicated region
    $region46: #{tpu_custom_call.1} parent=1 // pred_check
      _
    $region47: #{tpu_custom_call.1} parent=1 // pred_check_branch
      %108 = sbr.rel (0) target = $region49
    $region48: #{tpu_custom_call.1} parent=1 // pred_region
      %109 = dma.done [#allocation6], 128
    $region49: #{tpu_custom_call.1} parent=1 // pred_fallthru
      _
    // Predicated region
    $region50: #{tpu_custom_call.1} parent=1 // pred_check
      _
    $region51: #{tpu_custom_call.1} parent=1 // pred_check_branch
      %111 = sbr.rel (0) target = $region53
    $region52: #{tpu_custom_call.1} parent=1 // pred_region
      %112 = dma.done [#allocation6], 128
    $region53: #{tpu_custom_call.1} parent=1 // pred_fallthru
      _
    // Predicated region
    $region54: #{tpu_custom_call.1} parent=1 // pred_check
      _
    $region55: #{tpu_custom_call.1} parent=1 // pred_check_branch
      %114 = sbr.rel (0) target = $region57
    $region56: #{tpu_custom_call.1} parent=1 // pred_region
      %115 = dma.done [#allocation9], 1024
    $region57: #{tpu_custom_call.1} parent=1 // pred_fallthru
      _
    // Predicated region
    $region58: #{tpu_custom_call.1} parent=1 // pred_check
      _
    $region59: #{tpu_custom_call.1} parent=1 // pred_check_branch
      %117 = sbr.rel (0) target = $region61
    $region60: #{tpu_custom_call.1} parent=1 // pred_region
      %118 = dma.done [#allocation9], 1024
    $region61: #{tpu_custom_call.1} parent=1 // pred_fallthru
      _
    // Predicated region
    $region62: #{tpu_custom_call.1} parent=1 // pred_check
      _
    $region63: #{tpu_custom_call.1} parent=1 // pred_check_branch
      %120 = sbr.rel (0) target = $region65
    $region64: #{tpu_custom_call.1} parent=1 // pred_region
      %121 = dma.done [#allocation12], 1024
    $region65: #{tpu_custom_call.1} parent=1 // pred_fallthru
      _
    // Predicated region
    $region66: #{tpu_custom_call.1} parent=1 // pred_check
      _
    $region67: #{tpu_custom_call.1} parent=1 // pred_check_branch
      %123 = sbr.rel (0) target = $region69
    $region68: #{tpu_custom_call.1} parent=1 // pred_region
      %124 = dma.done [#allocation12], 1024
    $region69: #{tpu_custom_call.1} parent=1 // pred_fallthru
      _
    %v126 = vld [vmem:[#allocation2] sm:$0xff]
    %v127 = vpack.c.bf16 %v126, %v126
    %v128 = vld [vmem:[#allocation8] sm:$0xff]
    %v129 = vld [vmem:[#allocation8 + $0x8] sm:$0xff]
    %v130 = vld [vmem:[#allocation8 + $0x10] sm:$0xff]
    %v131 = vld [vmem:[#allocation8 + $0x18] sm:$0xff]
    %v132 = vld [vmem:[#allocation8 + $0x20] sm:$0xff]
    %v133 = vld [vmem:[#allocation8 + $0x28] sm:$0xff]
    %v134 = vld [vmem:[#allocation8 + $0x30] sm:$0xff]
    %v135 = vld [vmem:[#allocation8 + $0x38] sm:$0xff]
    %v136 = vld [vmem:[%s4] sm:$0x3]
    %v138 = vlaneseq
    %v139 = vshrl.u32 %v138, 7
    %v140 = vsub.s32 0, %v139
    %v141 = vrot.slane %v136, %v140
    %v142 = vlaneseq
    %v143 = vshrl.u32 %v142, 7
    %v144 = vsub.s32 1, %v143
    %v145 = vrot.slane %v136, %v144
    %v156 = vunpack.c.l.b16 %v128
    %v157 = vunpack.c.h.b16 %v128
    %v158 = vunpack.c.l.b16 %v129
    %v159 = vunpack.c.h.b16 %v129
    %v160 = vunpack.c.l.b16 %v130
    %v161 = vunpack.c.h.b16 %v130
    %v162 = vunpack.c.l.b16 %v131
    %v163 = vunpack.c.h.b16 %v131
    %v164 = vunpack.c.l.b16 %v132
    %v165 = vunpack.c.h.b16 %v132
    %v166 = vunpack.c.l.b16 %v133
    %v167 = vunpack.c.h.b16 %v133
    %v168 = vunpack.c.l.b16 %v134
    %v169 = vunpack.c.h.b16 %v134
    %v170 = vunpack.c.l.b16 %v135
    %v171 = vunpack.c.h.b16 %v135
    %v172 = vpack.c.b16 %v158, %v156
    %v173 = vpack.c.b16 %v159, %v157
    %v174 = vpack.c.b16 %v162, %v160
    %v175 = vpack.c.b16 %v163, %v161
    %v176 = vpack.c.b16 %v166, %v164
    %v177 = vpack.c.b16 %v167, %v165
    %v178 = vpack.c.b16 %v170, %v168
    %v179 = vpack.c.b16 %v171, %v169
    %vm188 = vcmask 523264
    %v190 = vsel %vm188, %v127, 0
    %192 = vmatprep.subr.bf16.mxu0 0
    %193 = vmatpush1.bf16.msra.mxu0 0
    %194 = vmatprep.subr.bf16.mxu0 0
    %195 = vmatpush1.bf16.msra.mxu0 0
    %196 = vmatprep.subr.bf16.mxu0 0
    %197 = vmatpush1.bf16.msra.mxu0 0
    %198 = vmatprep.subr.bf16.mxu0 0
    %199 = vmatpush1.bf16.msra.mxu0 0
    %200 = vmatprep.subr.bf16.mxu0 %v179
    %201 = vmatpush1.bf16.msra.mxu0 %v178
    %202 = vmatprep.subr.bf16.mxu0 %v177
    %203 = vmatpush1.bf16.msra.mxu0 %v176
    %204 = vmatprep.subr.bf16.mxu0 %v175
    %205 = vmatpush1.bf16.msra.mxu0 %v174
    %206 = vmatprep.subr.bf16.mxu0 %v173
    %207 = vmatpush1.bf16.msra.mxu0 %v172
    %208 = vmatprep.subr.bf16.mxu0 0
    %209 = vmatpush2.bf16.msra.mxu0 0
    %210 = vmatprep.subr.bf16.mxu0 0
    %211 = vmatpush2.bf16.msra.mxu0 0
    %212 = vmatprep.subr.bf16.mxu0 0
    %213 = vmatpush2.bf16.msra.mxu0 0
    %214 = vmatprep.subr.bf16.mxu0 0
    %215 = vmatpush2.bf16.msra.mxu0 0
    %216 = vmatprep.subr.bf16.mxu0 0
    %217 = vmatpush2.bf16.msra.mxu0 0
    %218 = vmatprep.subr.bf16.mxu0 0
    %219 = vmatpush2.bf16.msra.mxu0 0
    %220 = vmatprep.subr.bf16.mxu0 0
    %221 = vmatpush2.bf16.msra.mxu0 0
    %222 = vmatprep.subr.bf16.mxu0 0
    %223 = vmatpush2.bf16.msra.mxu0 0
    %224 = vmatprep.mubr.bf16.mxu0 0
    %225 = vmatmul.mubr.bf16.gmra.mxu0 %v190
    %v226 = vpop.f32.mrf.mxu0
    %v227 = vadd.f32 %v141, %v226
    %v228 = vpop.f32.mrf.mxu0
    %v229 = vadd.f32 %v145, %v228
    %v230 = vpop.f32.mrf.mxu0
    %v231 = vpop.f32.mrf.mxu0
    %232 = vdwg.mxu0
    %v233 = vsub.f32 0.0, %v227
    %v234 = vmul.f32 %v233, 1.442695
    %v235 = vpow.pop %v234
    %v236 = vadd.f32 %v235, 1.0
    %v237 = vrcp.pop %v236
    %v238 = vmul.f32 %v227, %v237
    %v239 = vld [vmem:[#allocation5] sm:$0xff]
    %v240 = vsub.f32 0.0, %v239
    %v241 = vmul.f32 %v240, 1.442695
    %v242 = vpow.pop %v241
    %v243 = vadd.f32 %v242, 1.0
    %v244 = vrcp.pop %v243
    %v245 = vmul.f32 %v239, %v244
    %v246 = vpack.c.bf16 %v245, %v245
    %v247 = vld [vmem:[#allocation10] sm:$0xf]
    %v248 = vld [vmem:[#allocation10 + $0x4] sm:$0xf]
    %v249 = vld [vmem:[#allocation10 + $0x8] sm:$0xf]
    %v250 = vld [vmem:[#allocation10 + $0xc] sm:$0xf]
    %v251 = vld [vmem:[#allocation10 + $0x10] sm:$0xf]
    %v252 = vld [vmem:[#allocation10 + $0x14] sm:$0xf]
    %v253 = vld [vmem:[#allocation10 + $0x18] sm:$0xf]
    %v254 = vld [vmem:[#allocation10 + $0x1c] sm:$0xf]
    %v255 = vld [vmem:[#allocation10 + $0x20] sm:$0xf]
    %v256 = vld [vmem:[#allocation10 + $0x24] sm:$0xf]
    %v257 = vld [vmem:[#allocation10 + $0x28] sm:$0xf]
    %v258 = vld [vmem:[#allocation10 + $0x2c] sm:$0xf]
    %v259 = vld [vmem:[#allocation10 + $0x30] sm:$0xf]
    %v260 = vld [vmem:[#allocation10 + $0x34] sm:$0xf]
    %v261 = vld [vmem:[#allocation10 + $0x38] sm:$0xf]
    %v262 = vld [vmem:[#allocation10 + $0x3c] sm:$0xf]
    %v263 = vld [vmem:[#allocation7] sm:$0xff]
    %v264 = vsub.f32 0.0, %v263
    %v265 = vmul.f32 %v264, 1.442695
    %v266 = vpow.pop %v265
    %v267 = vadd.f32 %v266, 1.0
    %v268 = vrcp.pop %v267
    %v269 = vmul.f32 %v263, %v268
    %v270 = vpack.c.bf16 %v269, %v269
    %v271 = vld [vmem:[#allocation11] sm:$0xf]
    %v272 = vld [vmem:[#allocation11 + $0x4] sm:$0xf]
    %v273 = vld [vmem:[#allocation11 + $0x8] sm:$0xf]
    %v274 = vld [vmem:[#allocation11 + $0xc] sm:$0xf]
    %v275 = vld [vmem:[#allocation11 + $0x10] sm:$0xf]
    %v276 = vld [vmem:[#allocation11 + $0x14] sm:$0xf]
    %v277 = vld [vmem:[#allocation11 + $0x18] sm:$0xf]
    %v278 = vld [vmem:[#allocation11 + $0x1c] sm:$0xf]
    %v279 = vld [vmem:[#allocation11 + $0x20] sm:$0xf]
    %v280 = vld [vmem:[#allocation11 + $0x24] sm:$0xf]
    %v281 = vld [vmem:[#allocation11 + $0x28] sm:$0xf]
    %v282 = vld [vmem:[#allocation11 + $0x2c] sm:$0xf]
    %v283 = vld [vmem:[#allocation11 + $0x30] sm:$0xf]
    %v284 = vld [vmem:[#allocation11 + $0x34] sm:$0xf]
    %v285 = vld [vmem:[#allocation11 + $0x38] sm:$0xf]
    %v286 = vld [vmem:[#allocation11 + $0x3c] sm:$0xf]
    %v303 = vunpack.c.l.b16 %v271
    %v304 = vunpack.c.l.b16 %v272
    %v305 = vunpack.c.l.b16 %v273
    %v306 = vunpack.c.l.b16 %v274
    %v307 = vunpack.c.l.b16 %v275
    %v308 = vunpack.c.l.b16 %v276
    %v309 = vunpack.c.l.b16 %v277
    %v310 = vunpack.c.l.b16 %v278
    %v311 = vunpack.c.l.b16 %v279
    %v312 = vunpack.c.l.b16 %v280
    %v313 = vunpack.c.l.b16 %v281
    %v314 = vunpack.c.l.b16 %v282
    %v315 = vunpack.c.l.b16 %v283
    %v316 = vunpack.c.l.b16 %v284
    %v317 = vunpack.c.l.b16 %v285
    %v318 = vunpack.c.l.b16 %v286
    %v319 = vpack.c.b16 %v304, %v303
    %v320 = vpack.c.b16 %v306, %v305
    %v321 = vpack.c.b16 %v308, %v307
    %v322 = vpack.c.b16 %v310, %v309
    %v323 = vpack.c.b16 %v312, %v311
    %v324 = vpack.c.b16 %v314, %v313
    %v325 = vpack.c.b16 %v316, %v315
    %v326 = vpack.c.b16 %v318, %v317
    %335 = vmatprep.subr.bf16.mxu0 0
    %336 = vmatpush1.bf16.msra.mxu0 %v326
    %337 = vmatprep.subr.bf16.mxu0 0
    %338 = vmatpush1.bf16.msra.mxu0 %v325
    %339 = vmatprep.subr.bf16.mxu0 0
    %340 = vmatpush1.bf16.msra.mxu0 %v324
    %341 = vmatprep.subr.bf16.mxu0 0
    %342 = vmatpush1.bf16.msra.mxu0 %v323
    %343 = vmatprep.subr.bf16.mxu0 0
    %344 = vmatpush1.bf16.msra.mxu0 %v322
    %345 = vmatprep.subr.bf16.mxu0 0
    %346 = vmatpush1.bf16.msra.mxu0 %v321
    %347 = vmatprep.subr.bf16.mxu0 0
    %348 = vmatpush1.bf16.msra.mxu0 %v320
    %349 = vmatprep.subr.bf16.mxu0 0
    %350 = vmatpush1.bf16.msra.mxu0 %v319
    %351 = vmatprep.subr.bf16.mxu0 0
    %352 = vmatpush2.bf16.msra.mxu0 0
    %353 = vmatprep.subr.bf16.mxu0 0
    %354 = vmatpush2.bf16.msra.mxu0 0
    %355 = vmatprep.subr.bf16.mxu0 0
    %356 = vmatpush2.bf16.msra.mxu0 0
    %357 = vmatprep.subr.bf16.mxu0 0
    %358 = vmatpush2.bf16.msra.mxu0 0
    %359 = vmatprep.subr.bf16.mxu0 0
    %360 = vmatpush2.bf16.msra.mxu0 0
    %361 = vmatprep.subr.bf16.mxu0 0
    %362 = vmatpush2.bf16.msra.mxu0 0
    %363 = vmatprep.subr.bf16.mxu0 0
    %364 = vmatpush2.bf16.msra.mxu0 0
    %365 = vmatprep.subr.bf16.mxu0 0
    %366 = vmatpush2.bf16.msra.mxu0 0
    %367 = vmatprep.mubr.bf16.mxu0 0
    %368 = vmatmul.mubr.bf16.gmra.mxu0 %v270
    %v369 = vpop.f32.mrf.mxu0
    %v370 = vadd.f32 0.0, %v369
    %v371 = vpop.f32.mrf.mxu0
    %v372 = vpop.f32.mrf.mxu0
    %v373 = vpop.f32.mrf.mxu0
    %374 = vdwg.mxu0
    %v391 = vunpack.c.l.b16 %v247
    %v392 = vunpack.c.l.b16 %v248
    %v393 = vunpack.c.l.b16 %v249
    %v394 = vunpack.c.l.b16 %v250
    %v395 = vunpack.c.l.b16 %v251
    %v396 = vunpack.c.l.b16 %v252
    %v397 = vunpack.c.l.b16 %v253
    %v398 = vunpack.c.l.b16 %v254
    %v399 = vunpack.c.l.b16 %v255
    %v400 = vunpack.c.l.b16 %v256
    %v401 = vunpack.c.l.b16 %v257
    %v402 = vunpack.c.l.b16 %v258
    %v403 = vunpack.c.l.b16 %v259
    %v404 = vunpack.c.l.b16 %v260
    %v405 = vunpack.c.l.b16 %v261
    %v406 = vunpack.c.l.b16 %v262
    %v407 = vpack.c.b16 %v392, %v391
    %v408 = vpack.c.b16 %v394, %v393
    %v409 = vpack.c.b16 %v396, %v395
    %v410 = vpack.c.b16 %v398, %v397
    %v411 = vpack.c.b16 %v400, %v399
    %v412 = vpack.c.b16 %v402, %v401
    %v413 = vpack.c.b16 %v404, %v403
    %v414 = vpack.c.b16 %v406, %v405
    %423 = vmatprep.subr.bf16.mxu0 0
    %424 = vmatpush1.bf16.msra.mxu0 %v414
    %425 = vmatprep.subr.bf16.mxu0 0
    %426 = vmatpush1.bf16.msra.mxu0 %v413
    %427 = vmatprep.subr.bf16.mxu0 0
    %428 = vmatpush1.bf16.msra.mxu0 %v412
    %429 = vmatprep.subr.bf16.mxu0 0
    %430 = vmatpush1.bf16.msra.mxu0 %v411
    %431 = vmatprep.subr.bf16.mxu0 0
    %432 = vmatpush1.bf16.msra.mxu0 %v410
    %433 = vmatprep.subr.bf16.mxu0 0
    %434 = vmatpush1.bf16.msra.mxu0 %v409
    %435 = vmatprep.subr.bf16.mxu0 0
    %436 = vmatpush1.bf16.msra.mxu0 %v408
    %437 = vmatprep.subr.bf16.mxu0 0
    %438 = vmatpush1.bf16.msra.mxu0 %v407
    %439 = vmatprep.subr.bf16.mxu0 0
    %440 = vmatpush2.bf16.msra.mxu0 0
    %441 = vmatprep.subr.bf16.mxu0 0
    %442 = vmatpush2.bf16.msra.mxu0 0
    %443 = vmatprep.subr.bf16.mxu0 0
    %444 = vmatpush2.bf16.msra.mxu0 0
    %445 = vmatprep.subr.bf16.mxu0 0
    %446 = vmatpush2.bf16.msra.mxu0 0
    %447 = vmatprep.subr.bf16.mxu0 0
    %448 = vmatpush2.bf16.msra.mxu0 0
    %449 = vmatprep.subr.bf16.mxu0 0
    %450 = vmatpush2.bf16.msra.mxu0 0
    %451 = vmatprep.subr.bf16.mxu0 0
    %452 = vmatpush2.bf16.msra.mxu0 0
    %453 = vmatprep.subr.bf16.mxu0 0
    %454 = vmatpush2.bf16.msra.mxu0 0
    %455 = vmatprep.mubr.bf16.mxu0 0
    %456 = vmatmul.mubr.bf16.gmra.mxu0 %v246
    %v457 = vpop.f32.mrf.mxu0
    %v458 = vadd.f32 %v370, %v457
    %v459 = vpop.f32.mrf.mxu0
    %v460 = vpop.f32.mrf.mxu0
    %v461 = vpop.f32.mrf.mxu0
    %462 = vdwg.mxu0
    %v463 = vld [vmem:[%s7] sm:$0x1]
    %v465 = vlaneseq
    %v466 = vshrl.u32 %v465, 7
    %v467 = vsub.s32 0, %v466
    %v468 = vrot.slane %v463, %v467
    %v470 = vadd.f32 %v458, %v468
    %v471 = vadd.f32 %v238, %v470
    %v472 = vpack.c.bf16 %v471, %v471
    %v473 = vld [vmem:[#allocation13] sm:$0xf]
    %v474 = vld [vmem:[#allocation13 + $0x4] sm:$0xf]
    %v475 = vld [vmem:[#allocation13 + $0x8] sm:$0xf]
    %v476 = vld [vmem:[#allocation13 + $0xc] sm:$0xf]
    %v477 = vld [vmem:[#allocation13 + $0x10] sm:$0xf]
    %v478 = vld [vmem:[#allocation13 + $0x14] sm:$0xf]
    %v479 = vld [vmem:[#allocation13 + $0x18] sm:$0xf]
    %v480 = vld [vmem:[#allocation13 + $0x1c] sm:$0xf]
    %v481 = vld [vmem:[#allocation13 + $0x20] sm:$0xf]
    %v482 = vld [vmem:[#allocation13 + $0x24] sm:$0xf]
    %v483 = vld [vmem:[#allocation13 + $0x28] sm:$0xf]
    %v484 = vld [vmem:[#allocation13 + $0x2c] sm:$0xf]
    %v485 = vld [vmem:[#allocation13 + $0x30] sm:$0xf]
    %v486 = vld [vmem:[#allocation13 + $0x34] sm:$0xf]
    %v487 = vld [vmem:[#allocation13 + $0x38] sm:$0xf]
    %v488 = vld [vmem:[#allocation13 + $0x3c] sm:$0xf]
    %v489 = vld [vmem:[%s9] sm:$0x1]
    %v491 = vlaneseq
    %v492 = vshrl.u32 %v491, 7
    %v493 = vsub.s32 0, %v492
    %v494 = vrot.slane %v489, %v493
    %v512 = vunpack.c.l.b16 %v473
    %v513 = vunpack.c.l.b16 %v474
    %v514 = vunpack.c.l.b16 %v475
    %v515 = vunpack.c.l.b16 %v476
    %v516 = vunpack.c.l.b16 %v477
    %v517 = vunpack.c.l.b16 %v478
    %v518 = vunpack.c.l.b16 %v479
    %v519 = vunpack.c.l.b16 %v480
    %v520 = vunpack.c.l.b16 %v481
    %v521 = vunpack.c.l.b16 %v482
    %v522 = vunpack.c.l.b16 %v483
    %v523 = vunpack.c.l.b16 %v484
    %v524 = vunpack.c.l.b16 %v485
    %v525 = vunpack.c.l.b16 %v486
    %v526 = vunpack.c.l.b16 %v487
    %v527 = vunpack.c.l.b16 %v488
    %v528 = vpack.c.b16 %v513, %v512
    %v529 = vpack.c.b16 %v515, %v514
    %v530 = vpack.c.b16 %v517, %v516
    %v531 = vpack.c.b16 %v519, %v518
    %v532 = vpack.c.b16 %v521, %v520
    %v533 = vpack.c.b16 %v523, %v522
    %v534 = vpack.c.b16 %v525, %v524
    %v535 = vpack.c.b16 %v527, %v526
    %544 = vmatprep.subr.bf16.mxu0 0
    %545 = vmatpush1.bf16.msra.mxu0 %v535
    %546 = vmatprep.subr.bf16.mxu0 0
    %547 = vmatpush1.bf16.msra.mxu0 %v534
    %548 = vmatprep.subr.bf16.mxu0 0
    %549 = vmatpush1.bf16.msra.mxu0 %v533
    %550 = vmatprep.subr.bf16.mxu0 0
    %551 = vmatpush1.bf16.msra.mxu0 %v532
    %552 = vmatprep.subr.bf16.mxu0 0
    %553 = vmatpush1.bf16.msra.mxu0 %v531
    %554 = vmatprep.subr.bf16.mxu0 0
    %555 = vmatpush1.bf16.msra.mxu0 %v530
    %556 = vmatprep.subr.bf16.mxu0 0
    %557 = vmatpush1.bf16.msra.mxu0 %v529
    %558 = vmatprep.subr.bf16.mxu0 0
    %559 = vmatpush1.bf16.msra.mxu0 %v528
    %560 = vmatprep.subr.bf16.mxu0 0
    %561 = vmatpush2.bf16.msra.mxu0 0
    %562 = vmatprep.subr.bf16.mxu0 0
    %563 = vmatpush2.bf16.msra.mxu0 0
    %564 = vmatprep.subr.bf16.mxu0 0
    %565 = vmatpush2.bf16.msra.mxu0 0
    %566 = vmatprep.subr.bf16.mxu0 0
    %567 = vmatpush2.bf16.msra.mxu0 0
    %568 = vmatprep.subr.bf16.mxu0 0
    %569 = vmatpush2.bf16.msra.mxu0 0
    %570 = vmatprep.subr.bf16.mxu0 0
    %571 = vmatpush2.bf16.msra.mxu0 0
    %572 = vmatprep.subr.bf16.mxu0 0
    %573 = vmatpush2.bf16.msra.mxu0 0
    %574 = vmatprep.subr.bf16.mxu0 0
    %575 = vmatpush2.bf16.msra.mxu0 0
    %576 = vmatprep.mubr.bf16.mxu0 0
    %577 = vmatmul.mubr.bf16.gmra.mxu0 %v472
    %v578 = vpop.f32.mrf.mxu0
    %v579 = vadd.f32 %v494, %v578
    %v580 = vpop.f32.mrf.mxu0
    %v581 = vpop.f32.mrf.mxu0
    %v582 = vpop.f32.mrf.mxu0
    %583 = vdwg.mxu0
    %v584 = vsub.f32 0.0, %v579
    %v585 = vmul.f32 %v584, 1.442695
    %v586 = vpow.pop %v585
    %v587 = vadd.f32 %v586, 1.0
    %v588 = vrcp.pop %v587
    %v589 = vmul.f32 %v579, %v588
    %v590 = vadd.f32 %v589, %v229
    %591 = vst [vmem:[#allocation14] sm:$0xff] %v590
    // Predicated region
    $region70: #{tpu_custom_call.1} parent=1 // pred_check
      _
    $region71: #{tpu_custom_call.1} parent=1 // pred_check_branch
      %593 = sbr.rel (0) target = $region73
    $region72: #{tpu_custom_call.1} parent=1 // pred_region
      %s595 = ssub.s32 128, 128
      %596 = vsyncadd [#allocation4], %s595
      %s598 = sshll.u32 [#allocation14], 4
      %s599 = int_to_ptr.vmem [resolvable:$true] %s598
      %601 = dma.vmem_to_hbm [thread:$0]  %s599, 128, %s10, [#allocation4]
    $region73: #{tpu_custom_call.1} parent=1 // pred_fallthru
      _
    // Predicated region
    $region74: #{tpu_custom_call.1} parent=1 // pred_check
      _
    $region75: #{tpu_custom_call.1} parent=1 // pred_check_branch
      %603 = sbr.rel (0) target = $region77
    $region76: #{tpu_custom_call.1} parent=1 // pred_region
      %604 = dma.done [#allocation4], 128
    $region77: #{tpu_custom_call.1} parent=1 // pred_fallthru
      _
    %605 = vsyncpa [#allocation3], 1
    %606 = vsyncpa [#allocation6], 1
    %607 = vsyncpa [#allocation9], 1
    %608 = vsyncpa [#allocation12], 1
    %609 = vsyncpa [#allocation4], 1

</llo_original>
